<compile_context>
chip_gen: v7x
topology: tpu7x:2x2x1
jax: 0.10.0
libtpu: 0.0.40
codegen_flags: <defaults>
</compile_context>

<pallas_src>
import functools

import jax
import jax.numpy as jnp
import numpy as np
from jax import lax
from jax.experimental import pallas as pl
from jax.experimental.pallas import tpu as pltpu


def _cdiv(a, b):
    return -(-a // b)


def _round_up(a, b):
    return _cdiv(a, b) * b


def _tpu_generation():
    """Best-effort TPU generation detection (0 if unknown / non-TPU)."""
    try:
        kind = jax.devices()[0].device_kind.lower()
    except Exception:
        return 0
    for g in (7, 6, 5, 4):
        if f"v{g}" in kind:
            return g
    return 0


def mi_disc_kernel(l_ref, c_ref, w1t_ref, w2t_ref, out_ref, *,
                   ew_dtype, use_mxu_head):
    # l_ref:   (C, T)        f32   local-feature columns (HW on lanes)
    # c_ref:   (hidden, 4)   f32   packed per-batch constants:
    #                              [:,0]=g_proj (G@W1g+b1), [:,1]=b2, [:,2]=w3, [:,3]=b3
    # w1t_ref: (hidden, C)       bf16
    # w2t_ref: (hidden, hidden)  bf16
    # out_ref: (1, T)        f32
    consts = c_ref[...]                              # (hidden, 4) f32
    gproj = consts[:, 0:1].astype(ew_dtype)          # (hidden, 1)
    b2 = consts[:, 1:2].astype(ew_dtype)             # (hidden, 1)
    w3 = consts[:, 2:3].astype(ew_dtype)             # (hidden, 1)
    b3 = consts[0:1, 3:4]                            # (1, 1) f32

    # Cast the streamed f32 tile to bf16 in-kernel (no extra HBM pass in the wrapper).
    l_bf16 = l_ref[...].astype(jnp.bfloat16)

    # Fused concat + 1x1-conv MLP (transposed): h1 = W1l^T @ L + (W1g^T @ g + b1)
    h1 = jnp.dot(w1t_ref[...], l_bf16, preferred_element_type=jnp.float32)
    h1 = jnp.maximum(h1.astype(ew_dtype) + gproj, 0.0)        # (hidden, T) in ew_dtype

    h2 = jnp.dot(w2t_ref[...], h1.astype(jnp.bfloat16),
                 preferred_element_type=jnp.float32)
    h2 = jnp.maximum(h2.astype(ew_dtype) + b2, 0.0)           # (hidden, T) in ew_dtype

    if use_mxu_head:
        # hidden >= 128: contract on the MXU instead of saturating the XLU reduce.
        out = lax.dot_general(w3.astype(jnp.bfloat16), h2.astype(jnp.bfloat16),
                              (((0,), (0,)), ((), ())),
                              preferred_element_type=jnp.float32) + b3
    else:
        # small hidden: VPU multiply + cross-sublane (XLU) reduce, f32 accumulate.
        out = jnp.sum((h2 * w3).astype(jnp.float32), axis=0, keepdims=True) + b3

    out_ref[...] = out.astype(out_ref.dtype)                  # (1, T) lane-dense store


def mi_discriminator(local_feature_map, global_feature, params, *, tile_hw=None):
    """local_feature_map: (N, C, H, W)  NCHW (PyTorch convention)
       global_feature:    (N, Cg)
       returns:           (N, 1, H, W)  NCHW (output of the 1x1-conv net)
    """
    N, C, H, W = local_feature_map.shape
    HW = H * W
    w1l, w1g, b1, w2, b2, w3, b3 = params
    hidden = w2.shape[0]

    # ---- generation-aware configuration ----
    gen = _tpu_generation()
    ew_dtype = jnp.bfloat16 if gen >= 6 else jnp.float32      # bf16 VALU only on v6e/v7x
    if gen == 7:
        vmem_limit = 48 << 20          # v7x: 64 MiB physical, leave headroom
        default_tile = 4096
    elif gen in (5, 6):
        vmem_limit = 96 << 20          # v5e/v6e: 128 MiB physical
        default_tile = 8192
    else:
        vmem_limit = None
        default_tile = 2048
    tile_hw = default_tile if tile_hw is None else int(tile_hw)

    # ---- tile selection (HW on the lane axis, multiple of 128) ----
    c_pad = _round_up(C, 8)
    h_pad = _round_up(hidden, 8)
    ew_bytes = 2 if ew_dtype == jnp.bfloat16 else 4
    # Rough per-lane-column VMEM cost: L (f32, double-buffered) + h1/h2 intermediates
    # + f32 dot accumulator + padded output (double-buffered).
    bytes_per_col = (c_pad * 4 * 2) + (2 * h_pad * ew_bytes) + (h_pad * 4) + (8 * 4 * 2)
    budget = int(0.5 * (vmem_limit if vmem_limit is not None else (32 << 20)))
    tile_cap = max(128, (budget // bytes_per_col) // 128 * 128)

    tile = max(128, (tile_hw // 128) * 128)
    tile = min(tile, tile_cap, _round_up(HW, 128))

    # v7x megacore: make sure the grid exposes enough parallel steps for 2 TensorCores.
    if gen == 7:
        while N * _cdiv(HW, tile) < 4 and tile > 128:
            tile = max(128, (tile // 2) // 128 * 128)

    hw_pad = _round_up(HW, tile)

    # ---- wrapper-side prep (tiny / free ops only; L stays f32, no bf16 copy) ----
    l_flat = local_feature_map.reshape(N, C, HW)              # free reshape of NCHW
    if hw_pad != HW:
        l_flat = jnp.pad(l_flat, ((0, 0), (0, 0), (0, hw_pad - HW)))
    l_flat = l_flat.astype(jnp.float32)

    # Precompute the global branch of layer 1 and pack all per-column constants into
    # one (N, hidden, 4) f32 array: [g_proj, b2, w3, b3].
    g_proj = (global_feature.astype(jnp.float32) @ w1g.astype(jnp.float32)
              + b1.astype(jnp.float32).reshape(1, hidden))    # (N, hidden)
    b2v = jnp.broadcast_to(b2.reshape(1, hidden).astype(jnp.float32), (N, hidden))
    w3v = jnp.broadcast_to(w3.reshape(1, hidden).astype(jnp.float32), (N, hidden))
    b3v = jnp.broadcast_to(b3.reshape(()).astype(jnp.float32), (N, hidden))
    consts = jnp.stack([g_proj, b2v, w3v, b3v], axis=-1)      # (N, hidden, 4) f32

    w1t = jnp.asarray(w1l.T, jnp.bfloat16)                    # (hidden, C)
    w2t = jnp.asarray(w2.T, jnp.bfloat16)                     # (hidden, hidden)

    grid = (N, hw_pad // tile)
    kernel = functools.partial(mi_disc_kernel, ew_dtype=ew_dtype,
                               use_mxu_head=(hidden >= 128))

    out = pl.pallas_call(
        kernel,
        out_shape=jax.ShapeDtypeStruct((N, 1, hw_pad), jnp.float32),
        grid_spec=pltpu.PrefetchScalarGridSpec(
            num_scalar_prefetch=0,
            grid=grid,
            in_specs=[
                pl.BlockSpec((None, C, tile), lambda n, j: (n, 0, j)),       # L columns
                pl.BlockSpec((None, hidden, 4), lambda n, j: (n, 0, 0)),     # packed consts
                pl.BlockSpec((hidden, C), lambda n, j: (0, 0)),              # W1l^T
                pl.BlockSpec((hidden, hidden), lambda n, j: (0, 0)),         # W2^T
            ],
            out_specs=pl.BlockSpec((None, 1, tile), lambda n, j: (n, 0, j)),
        ),
        compiler_params=pltpu.CompilerParams(
            dimension_semantics=("parallel", "parallel"),
            vmem_limit_bytes=vmem_limit),
    )(l_flat, consts, w1t, w2t)

    # (N, 1, hw_pad) -> drop tail padding -> NCHW (already channel-first).
    return out[:, :, :HW].reshape(N, 1, H, W)


def init_params(key, c_local, c_global, hidden):
    ks = jax.random.split(key, 4)
    scale1 = 1.0 / np.sqrt(c_local + c_global)
    scale2 = 1.0 / np.sqrt(hidden)
    w1 = jax.random.normal(ks[0], (c_local + c_global, hidden), jnp.float32) * scale1
    w1l, w1g = w1[:c_local], w1[c_local:]
    b1 = jnp.zeros((1, hidden), jnp.float32)
    w2 = jax.random.normal(ks[1], (hidden, hidden), jnp.float32) * scale2
    b2 = jnp.zeros((1, hidden), jnp.float32)
    w3 = jax.random.normal(ks[2], (hidden, 1), jnp.float32) * scale2
    b3 = jnp.zeros((1, 1), jnp.float32)
    return (w1l, w1g, b1, w2, b2, w3, b3)


def reference(local_feature_map, global_feature, params):
    """Pure-JAX f32 reference of the same forward (concat channels + 1x1-conv MLP)."""
    N, C, H, W = local_feature_map.shape
    Cg = global_feature.shape[1]
    w1l, w1g, b1, w2, b2, w3, b3 = params
    L = jnp.transpose(local_feature_map, (0, 2, 3, 1)).reshape(-1, C)
    G = jnp.broadcast_to(global_feature[:, None, None, :], (N, H, W, Cg)).reshape(-1, Cg)
    x = jnp.concatenate([L, G], axis=1)
    w1 = jnp.concatenate([w1l, w1g], axis=0)
    h1 = jnp.maximum(x @ w1 + b1, 0.0)
    h2 = jnp.maximum(h1 @ w2 + b2, 0.0)
    o = h2 @ w3 + b3
    return jnp.transpose(o.reshape(N, H, W, 1), (0, 3, 1, 2))


if __name__ == "__main__":
    key = jax.random.PRNGKey(0)
    k_l, k_g, k_p = jax.random.split(key, 3)

    N, C, H, W = 2, 4, 16, 16      # local feature map (NCHW)
    Cg = 8                         # global feature vector size
    hidden = 32

    local_feature_map = jax.random.normal(k_l, (N, C, H, W), jnp.float32)
    global_feature = jax.random.normal(k_g, (N, Cg), jnp.float32)
    params = init_params(k_p, C, Cg, hidden)

    out = mi_discriminator(local_feature_map, global_feature, params)
    out = jax.block_until_ready(out)

    ref = jax.block_until_ready(reference(local_feature_map, global_feature, params))
    assert out.shape == (N, 1, H, W)
    # bf16 matmul inputs (f32 accumulation) + optional bf16 elementwise on v6e/v7x
    # -> loosened tolerance vs the f32 reference.
    np.testing.assert_allclose(np.asarray(out), np.asarray(ref), rtol=5e-2, atol=5e-2)

    print("KERNEL_OK")
</pallas_src>

<mosaic_0001>
module attributes {stable_mosaic.version = 11 : i64} {
  func.func @mi_disc_kernel(%arg0: i32, %arg1: i32, %arg2: memref<1x4x256xf32, #tpu.memory_space<vmem>>, %arg3: memref<1x32x4xf32, #tpu.memory_space<vmem>>, %arg4: memref<32x4xbf16, #tpu.memory_space<vmem>>, %arg5: memref<32x32xbf16, #tpu.memory_space<vmem>>, %arg6: memref<1x1x256xf32, #tpu.memory_space<vmem>>) attributes {dimension_semantics = [#tpu.dimension_semantics<parallel>, #tpu.dimension_semantics<parallel>], iteration_bounds = array<i64: 2, 1>, scalar_prefetch = 0 : i64, scratch_operands = 0 : i64, tpu.core_type = #tpu.core_type<tc>, window_params = [{transform_indices = @transform_0, window_bounds = array<i64: 1, 4, 256>}, {transform_indices = @transform_1, window_bounds = array<i64: 1, 32, 4>}, {pipeline_mode = #tpu.pipeline_mode<synchronous>, transform_indices = @transform_2, window_bounds = array<i64: 32, 4>}, {pipeline_mode = #tpu.pipeline_mode<synchronous>, transform_indices = @transform_3, window_bounds = array<i64: 32, 32>}, {transform_indices = @transform_4, window_bounds = array<i64: 1, 1, 256>}]} {
    %c0 = arith.constant 0 : index
    %c0_0 = arith.constant 0 : index
    %c0_1 = arith.constant 0 : index
    %0 = vector.load %arg3[%c0, %c0_0, %c0_1] : memref<1x32x4xf32, #tpu.memory_space<vmem>>, vector<1x32x4xf32>
    %1 = vector.shape_cast %0 : vector<1x32x4xf32> to vector<32x4xf32>
    %2 = vector.extract_strided_slice %1 {offsets = [0, 0], sizes = [32, 1], strides = [1, 1]} : vector<32x4xf32> to vector<32x1xf32>
    %3 = vector.extract_strided_slice %1 {offsets = [0, 1], sizes = [32, 1], strides = [1, 1]} : vector<32x4xf32> to vector<32x1xf32>
    %4 = vector.extract_strided_slice %1 {offsets = [0, 2], sizes = [32, 1], strides = [1, 1]} : vector<32x4xf32> to vector<32x1xf32>
    %5 = vector.extract_strided_slice %1 {offsets = [0, 3], sizes = [1, 1], strides = [1, 1]} : vector<32x4xf32> to vector<1x1xf32>
    %c0_2 = arith.constant 0 : index
    %c0_3 = arith.constant 0 : index
    %c0_4 = arith.constant 0 : index
    %6 = vector.load %arg2[%c0_2, %c0_3, %c0_4] : memref<1x4x256xf32, #tpu.memory_space<vmem>>, vector<1x4x256xf32>
    %7 = vector.shape_cast %6 : vector<1x4x256xf32> to vector<4x256xf32>
    %8 = arith.truncf %7 : vector<4x256xf32> to vector<4x256xbf16>
    %c0_5 = arith.constant 0 : index
    %c0_6 = arith.constant 0 : index
    %9 = vector.load %arg4[%c0_5, %c0_6] : memref<32x4xbf16, #tpu.memory_space<vmem>>, vector<32x4xbf16>
    %cst = arith.constant dense<0.000000e+00> : vector<32x256xf32>
    %10 = tpu.matmul %9, %8, %cst {dimension_numbers = #tpu.dot_dimension_numbers<[1], [0], [0], [1], [0, 0, 1, 1], [], []>} : vector<32x4xbf16>, vector<4x256xbf16>, vector<32x256xf32> -> vector<32x256xf32>
    %11 = vector.broadcast %2 : vector<32x1xf32> to vector<32x256xf32>
    %12 = arith.addf %10, %11 : vector<32x256xf32>
    %cst_7 = arith.constant 0.000000e+00 : f32
    %13 = vector.broadcast %cst_7 : f32 to vector<32x256xf32>
    %14 = arith.maximumf %12, %13 : vector<32x256xf32>
    %c0_8 = arith.constant 0 : index
    %c0_9 = arith.constant 0 : index
    %15 = vector.load %arg5[%c0_8, %c0_9] : memref<32x32xbf16, #tpu.memory_space<vmem>>, vector<32x32xbf16>
    %16 = arith.truncf %14 : vector<32x256xf32> to vector<32x256xbf16>
    %cst_10 = arith.constant dense<0.000000e+00> : vector<32x256xf32>
    %17 = tpu.matmul %15, %16, %cst_10 {dimension_numbers = #tpu.dot_dimension_numbers<[1], [0], [0], [1], [0, 0, 1, 1], [], []>} : vector<32x32xbf16>, vector<32x256xbf16>, vector<32x256xf32> -> vector<32x256xf32>
    %18 = vector.broadcast %3 : vector<32x1xf32> to vector<32x256xf32>
    %19 = arith.addf %17, %18 : vector<32x256xf32>
    %cst_11 = arith.constant 0.000000e+00 : f32
    %20 = vector.broadcast %cst_11 : f32 to vector<32x256xf32>
    %21 = arith.maximumf %19, %20 : vector<32x256xf32>
    %22 = vector.broadcast %4 : vector<32x1xf32> to vector<32x256xf32>
    %23 = arith.mulf %21, %22 : vector<32x256xf32>
    %cst_12 = arith.constant dense<0.000000e+00> : vector<256xf32>
    %24 = vector.multi_reduction <add>, %23, %cst_12 [0] : vector<32x256xf32> to vector<256xf32>
    %25 = vector.shape_cast %24 : vector<256xf32> to vector<1x256xf32>
    %26 = vector.broadcast %5 : vector<1x1xf32> to vector<1x256xf32>
    %27 = arith.addf %25, %26 : vector<1x256xf32>
    %c0_13 = arith.constant 0 : index
    %c0_14 = arith.constant 0 : index
    %c0_15 = arith.constant 0 : index
    %28 = vector.load %arg6[%c0_13, %c0_14, %c0_15] : memref<1x1x256xf32, #tpu.memory_space<vmem>>, vector<1x1x256xf32>
    %29 = vector.shape_cast %28 : vector<1x1x256xf32> to vector<1x256xf32>
    %30 = vector.shape_cast %27 : vector<1x256xf32> to vector<1x1x256xf32>
    tpu.vector_store %arg6[%c0_13, %c0_14, %c0_15], %30 {strides = array<i32>} : memref<1x1x256xf32, #tpu.memory_space<vmem>>, vector<1x1x256xf32>,
    return
  }
  func.func @transform_0(%arg0: i32, %arg1: i32) -> (i32, i32, i32) {
    %c0_i32 = arith.constant 0 : i32
    %c0_i32_0 = arith.constant 0 : i32
    return %arg0, %c0_i32, %arg1 : i32, i32, i32
  }
  func.func @transform_1(%arg0: i32, %arg1: i32) -> (i32, i32, i32) {
    %c0_i32 = arith.constant 0 : i32
    %c0_i32_0 = arith.constant 0 : i32
    %c0_i32_1 = arith.constant 0 : i32
    return %arg0, %c0_i32, %c0_i32_0 : i32, i32, i32
  }
  func.func @transform_2(%arg0: i32, %arg1: i32) -> (i32, i32) {
    %c0_i32 = arith.constant 0 : i32
    %c0_i32_0 = arith.constant 0 : i32
    %c0_i32_1 = arith.constant 0 : i32
    return %c0_i32, %c0_i32_0 : i32, i32
  }
  func.func @transform_3(%arg0: i32, %arg1: i32) -> (i32, i32) {
    %c0_i32 = arith.constant 0 : i32
    %c0_i32_0 = arith.constant 0 : i32
    %c0_i32_1 = arith.constant 0 : i32
    return %c0_i32, %c0_i32_0 : i32, i32
  }
  func.func @transform_4(%arg0: i32, %arg1: i32) -> (i32, i32, i32) {
    %c0_i32 = arith.constant 0 : i32
    %c0_i32_0 = arith.constant 0 : i32
    return %arg0, %c0_i32, %arg1 : i32, i32, i32
  }
}

</mosaic_0001>

<llo_original>
// kernel: tpu_custom_call.1
$region0: #{tpu_custom_call.1}
  #allocation0 [shape = 'u32[]', space=smem, size = 0x4, offset = 0x4, fixed_abs, tag = 'smem constant byte address 0x4 - core index']
  #allocation1 [shape = 'u32[144,128]{1,0:T(1,128)}', space=vmem, size = 0x12000, scoped, tag = 'internal scratch']
  %s0 = inlined_call_operand.vmem [shape: f32[2,4,256], index: 0, kind: input, shape index: {}]
  %s1 = inlined_call_operand.vmem [shape: f32[2,32,4], index: 1, kind: input, shape index: {}]
  %s2 = inlined_call_operand.vmem [shape: bf16[32,4], index: 2, kind: input, shape index: {}]
  %s3 = inlined_call_operand.vmem [shape: bf16[32,32], index: 3, kind: input, shape index: {}]
  %s4 = inlined_call_operand.hbm [shape: f32[2,1,256], index: 4, kind: output, shape index: {}]
  %s5 = sld [smem:[#allocation0]]
  $region49: #{tpu_custom_call.1} parent=0
    _
  %s7 = ssub.s32 1, %s5
  %s8 = scalar_select 0, %s7, %s5
  $region1: #{tpu_custom_call.1} parent=0
    #allocation2 [shape = 'u8[2048]{0}', space=vmem, size = 0x800, scoped, tag = 'output window, operand 0']
    #allocation3 [shape = 's32[2]{0}', space=sflag, size = 0x8, scoped, tag = 'scoped memory for tpu_custom_call.1']
    %9 = vsyncpa [#allocation3], 0
    %s10 = scalar_lea.sflag [#allocation3], 1
    %11 = vsyncpa %s10, 0
    loop: start=0, step=1, limit=4
    $region2: #{tpu_custom_call.1} parent=1 // loop_pre_header
      _
    $region3: #{tpu_custom_call.1} parent=1 // loop_header
      %s13 = sphi 0, %s17
      %p14 = scmp.ge.s32.totalorder %s13, 4
      %s20 = sphi 0, %s32
      %s21 = sphi 0, %s28
      %s22 = sphi 0, %s20
      %s23 = sphi 0, %s21
      %s24 = sphi 0, %s22
      %s25 = sphi 0, %s23
      %s37 = sphi 0, %s39
      %s40 = sphi 0, %s37
      %s41 = sphi 0, %s40
      %s57 = sphi 0, %s41
      %s63 = sphi 0, %s65
      %s66 = sphi 0, %s63
      %s67 = sphi 0, %s66
      %s83 = sphi 0, %s67
      %s87 = sphi 0, %s87
      %s89 = sphi 0, %s87
      %s90 = sphi 0, %s89
      %s104 = sphi 0, %s90
      %s108 = sphi 0, %s108
      %s110 = sphi 0, %s108
      %s111 = sphi 0, %s110
      %s125 = sphi 0, %s111
      %s133 = sphi 0, %s135
      %s136 = sphi 0, %s133
      %s137 = sphi 0, %s136
      %s153 = sphi 0, %s137
    $region4: #{tpu_custom_call.1} parent=1 // loop_header_branch
      %16 = sbr.rel (%p14) target = $region8
    $region5: #{tpu_custom_call.1} parent=1 // loop_body
      %s18 = ssub.s32 %s13, 1
      %s19 = ssub.s32 %s13, 2
      %s26 = sadd.s32 1, %s21
      %p27 = scmp.ge.s32.totalorder %s26, 1
      %s28 = scalar_select %p27, 0, %s26
      %s29 = sadd.s32 1, %s20
      %s30 = scalar_select %p27, %s29, %s20
      %p31 = scmp.ge.s32.totalorder %s30, 2
      %s32 = scalar_select %p31, 0, %s30
      %s33 = ssub.s32 %s20, %s32
      %s34 = ssub.s32 %s21, %s28
      %s35 = sor.u32 %s33, %s34
      %p36 = scmp.eq.s32.totalorder %s35, 0
      %s38 = sadd.s32 %s37, 1
      %s39 = scalar_select %p36, %s37, %s38
      %p42 = pneg %p36
      %p43 = scmp.eq.s32.totalorder %s13, 1
      %p44 = por %p42, %p43
      %p45 = scmp.ne.s32.totalorder %s37, %s40
      %p46 = scmp.eq.s32.totalorder %s13, 0
      %p47 = por %p45, %p46
      %p48 = scmp.ne.s32.totalorder %s37, %s40
      %p49 = scmp.eq.s32.totalorder %s18, 1
      %p50 = por %p48, %p49
      %p51 = scmp.ne.s32.totalorder %s40, %s41
      %p52 = scmp.eq.s32.totalorder %s18, 0
      %p53 = por %p51, %p52
      %p54 = scmp.ne.s32.totalorder %s40, %s41
      %p55 = scmp.eq.s32.totalorder %s19, 1
      %p56 = por %p54, %p55
      %p58 = scmp.ne.s32.totalorder %s41, %s57
      %p59 = scmp.eq.s32.totalorder %s19, 0
      %p60 = por %p58, %p59
      %s61 = ssub.s32 %s20, %s32
      %p62 = scmp.eq.s32.totalorder %s61, 0
      %s64 = sadd.s32 %s63, 1
      %s65 = scalar_select %p62, %s63, %s64
      %p68 = pneg %p62
      %p69 = scmp.eq.s32.totalorder %s13, 1
      %p70 = por %p68, %p69
      %p71 = scmp.ne.s32.totalorder %s63, %s66
      %p72 = scmp.eq.s32.totalorder %s13, 0
      %p73 = por %p71, %p72
      %p74 = scmp.ne.s32.totalorder %s63, %s66
      %p75 = scmp.eq.s32.totalorder %s18, 1
      %p76 = por %p74, %p75
      %p77 = scmp.ne.s32.totalorder %s66, %s67
      %p78 = scmp.eq.s32.totalorder %s18, 0
      %p79 = por %p77, %p78
      %p80 = scmp.ne.s32.totalorder %s66, %s67
      %p81 = scmp.eq.s32.totalorder %s19, 1
      %p82 = por %p80, %p81
      %p84 = scmp.ne.s32.totalorder %s67, %s83
      %p85 = scmp.eq.s32.totalorder %s19, 0
      %p86 = por %p84, %p85
      %s88 = sadd.s32 %s87, 1
      %p91 = scmp.eq.s32.totalorder %s13, 1
      %p92 = scmp.ne.s32.totalorder %s87, %s89
      %p93 = scmp.eq.s32.totalorder %s13, 0
      %p94 = por %p92, %p93
      %p95 = scmp.ne.s32.totalorder %s87, %s89
      %p96 = scmp.eq.s32.totalorder %s18, 1
      %p97 = por %p95, %p96
      %p98 = scmp.ne.s32.totalorder %s89, %s90
      %p99 = scmp.eq.s32.totalorder %s18, 0
      %p100 = por %p98, %p99
      %p101 = scmp.ne.s32.totalorder %s89, %s90
      %p102 = scmp.eq.s32.totalorder %s19, 1
      %p103 = por %p101, %p102
      %p105 = scmp.ne.s32.totalorder %s90, %s104
      %p106 = scmp.eq.s32.totalorder %s19, 0
      %p107 = por %p105, %p106
      %s109 = sadd.s32 %s108, 1
      %p112 = scmp.eq.s32.totalorder %s13, 1
      %p113 = scmp.ne.s32.totalorder %s108, %s110
      %p114 = scmp.eq.s32.totalorder %s13, 0
      %p115 = por %p113, %p114
      %p116 = scmp.ne.s32.totalorder %s108, %s110
      %p117 = scmp.eq.s32.totalorder %s18, 1
      %p118 = por %p116, %p117
      %p119 = scmp.ne.s32.totalorder %s110, %s111
      %p120 = scmp.eq.s32.totalorder %s18, 0
      %p121 = por %p119, %p120
      %p122 = scmp.ne.s32.totalorder %s110, %s111
      %p123 = scmp.eq.s32.totalorder %s19, 1
      %p124 = por %p122, %p123
      %p126 = scmp.ne.s32.totalorder %s111, %s125
      %p127 = scmp.eq.s32.totalorder %s19, 0
      %p128 = por %p126, %p127
      %s129 = ssub.s32 %s20, %s32
      %s130 = ssub.s32 %s21, %s28
      %s131 = sor.u32 %s129, %s130
      %p132 = scmp.eq.s32.totalorder %s131, 0
      %s134 = sadd.s32 %s133, 1
      %s135 = scalar_select %p132, %s133, %s134
      %p138 = pneg %p132
      %p139 = scmp.eq.s32.totalorder %s13, 1
      %p140 = por %p138, %p139
      %p141 = scmp.ne.s32.totalorder %s133, %s136
      %p142 = scmp.eq.s32.totalorder %s13, 0
      %p143 = por %p141, %p142
      %p144 = scmp.ne.s32.totalorder %s133, %s136
      %p145 = scmp.eq.s32.totalorder %s18, 1
      %p146 = por %p144, %p145
      %p147 = scmp.ne.s32.totalorder %s136, %s137
      %p148 = scmp.eq.s32.totalorder %s18, 0
      %p149 = por %p147, %p148
      %p150 = scmp.ne.s32.totalorder %s136, %s137
      %p151 = scmp.eq.s32.totalorder %s19, 1
      %p152 = por %p150, %p151
      %p154 = scmp.ne.s32.totalorder %s137, %s153
      %p155 = scmp.eq.s32.totalorder %s19, 0
      %p156 = por %p154, %p155
      %p157 = scmp.le.s32.totalorder 1, %s13
      %p158 = scmp.lt.s32.totalorder %s13, 3
      %p159 = pnand %p157, %p158
      %p160 = pneg %p159
      // Predicated region
      $region9: #{tpu_custom_call.1} parent=5 // pred_check
        _
      $region10: #{tpu_custom_call.1} parent=5 // pred_check_branch
        %162 = sbr.rel (%p159) target = $region12
      $region11: #{tpu_custom_call.1} parent=5 // pred_region
        %s163 = ssub.s32 %s13, 1
        // Predicated region
        $region13: #{tpu_custom_call.1} parent=11 // pred_check
          %p164 = pneg %p100
        $region14: #{tpu_custom_call.1} parent=11 // pred_check_branch
          %166 = sbr.rel (%p164) target = $region16
        $region15: #{tpu_custom_call.1} parent=11 // pred_region
          _
        $region16: #{tpu_custom_call.1} parent=11 // pred_fallthru
          _
        // Predicated region
        $region17: #{tpu_custom_call.1} parent=11 // pred_check
          %p167 = pneg %p121
        $region18: #{tpu_custom_call.1} parent=11 // pred_check_branch
          %169 = sbr.rel (%p167) target = $region20
        $region19: #{tpu_custom_call.1} parent=11 // pred_region
          _
        $region20: #{tpu_custom_call.1} parent=11 // pred_fallthru
          _
      $region12: #{tpu_custom_call.1} parent=5 // pred_fallthru
        _
      %p170 = scmp.lt.s32.totalorder %s13, 2
      // Predicated region
      $region21: #{tpu_custom_call.1} parent=5 // pred_check
        %p171 = pneg %p170
      $region22: #{tpu_custom_call.1} parent=5 // pred_check_branch
        %173 = sbr.rel (%p171) target = $region24
      $region23: #{tpu_custom_call.1} parent=5 // pred_region
        // Predicated region
        $region25: #{tpu_custom_call.1} parent=23 // pred_check
          %p174 = pneg %p47
        $region26: #{tpu_custom_call.1} parent=23 // pred_check_branch
          %176 = sbr.rel (%p174) target = $region28
        $region27: #{tpu_custom_call.1} parent=23 // pred_region
          %s177 = smul.u32 2, %s21
          %p178 = scmp.lt.s32.totalorder %s20, 1
          %s179 = scalar_select %p178, %s20, 1
          %p180 = scmp.lt.s32.totalorder %s177, 1
          %s181 = scalar_select %p180, %s177, 1
          %s182 = smul.addr %s179, 2
          %s183 = sadd.s32 %s181, %s182
          %s184 = smul.addr %s183, 4
          %s185 = scalar_lea.vmem %s0, %s184
          %s186 = smul.u32 2, %s21
        $region28: #{tpu_custom_call.1} parent=23 // pred_fallthru
          _
        // Predicated region
        $region29: #{tpu_custom_call.1} parent=23 // pred_check
          %p187 = pneg %p73
        $region30: #{tpu_custom_call.1} parent=23 // pred_check_branch
          %189 = sbr.rel (%p187) target = $region32
        $region31: #{tpu_custom_call.1} parent=23 // pred_region
          %p190 = scmp.lt.s32.totalorder %s20, 1
          %s191 = scalar_select %p190, %s20, 1
          %s192 = smul.addr %s191, 4
          %s193 = smul.addr %s192, 8
          %s194 = scalar_lea.vmem %s1, %s193
        $region32: #{tpu_custom_call.1} parent=23 // pred_fallthru
          _
      $region24: #{tpu_custom_call.1} parent=5 // pred_fallthru
        _
      %p195 = scmp.le.s32.totalorder 1, %s13
      %p196 = scmp.lt.s32.totalorder %s13, 3
      %p197 = pnand %p195, %p196
      %p198 = pneg %p197
      // Predicated region
      $region33: #{tpu_custom_call.1} parent=5 // pred_check
        _
      $region34: #{tpu_custom_call.1} parent=5 // pred_check_branch
        %200 = sbr.rel (%p197) target = $region36
      $region35: #{tpu_custom_call.1} parent=5 // pred_region
        %s201 = ssub.s32 %s13, 1
        %s202 = smul.u32 2, %s23
        %p203 = scmp.lt.s32.totalorder %s22, 1
        %s204 = scalar_select %p203, %s22, 1
        %p205 = scmp.lt.s32.totalorder %s202, 1
        %s206 = scalar_select %p205, %s202, 1
        %s207 = smul.addr %s204, 2
        %s208 = sadd.s32 %s206, %s207
        %s209 = smul.addr %s208, 4
        %s210 = scalar_lea.vmem %s0, %s209
        %p211 = pneg %p53
        %p212 = pneg %p50
        %p213 = scmp.lt.s32.totalorder %s22, 1
        %s214 = scalar_select %p213, %s22, 1
        %s215 = smul.addr %s214, 4
        %s216 = smul.addr %s215, 8
        %s217 = scalar_lea.vmem %s1, %s216
        %p218 = pneg %p79
        %p219 = pneg %p76
        %p220 = pneg %p100
        %p221 = pneg %p97
        %p222 = pneg %p121
        %p223 = pneg %p118
        %p224 = pneg %p149
        %p225 = pneg %p146
        %s226 = sand.u32 %s136, 1
        %s227 = scalar_lea.sflag [#allocation3], %s226
        %s228 = sand.u32 %s136, 1
        %s229 = smul.addr %s228, 2
        %s230 = scalar_lea.vmem [#allocation2], %s229
        %s231 = smul.u32 2, %s23
        %p232 = scmp.lt.s32.totalorder %s22, 1
        %s233 = scalar_select %p232, %s22, 1
        %p234 = scmp.lt.s32.totalorder %s231, 1
        %s235 = scalar_select %p234, %s231, 1
        %s236 = smul.addr %s233, 2
        %s237 = sadd.s32 %s235, %s236
        %s238 = smul.addr %s237, 4
        %s239 = scalar_lea.vmem %s0, %s238
        %s240 = smul.u32 2, %s23
        %p241 = scmp.lt.s32.totalorder %s22, 1
        %s242 = scalar_select %p241, %s22, 1
        %s243 = smul.addr %s242, 4
        %s244 = smul.addr %s243, 8
        %s245 = scalar_lea.vmem %s1, %s244
        %s246 = smul.u32 2, %s23
        %v248 = vld [vmem:[%s245] sm:$0xff]
        %v249 = vld [vmem:[%s245 + $0x8] sm:$0xff]
        %v250 = vld [vmem:[%s245 + $0x10] sm:$0xff]
        %v251 = vld [vmem:[%s245 + $0x18] sm:$0xff]
        %v252 = vld [vmem:[%s239] sm:$0xff]
        %v254 = vcombine.high %v252, %v252
        %v256 = vpack.c.bf16 %v252, %v252
        %v257 = vpack.c.bf16 %v254, %v254
        %v258 = vld [vmem:[%s2] sm:$0xf]
        %v259 = vld [vmem:[%s2 + $0x4] sm:$0xf]
        %v260 = vld [vmem:[%s2 + $0x8] sm:$0xf]
        %v261 = vld [vmem:[%s2 + $0xc] sm:$0xf]
        %263 = vset.pattern.permute.xlu0 0
        %264 = vperm.xlu0 %263, %v248
        %v265 = vpop.permute.xlu0 %264
        %268 = vset.pattern.permute.xlu0 0
        %269 = vperm.xlu0 %268, %v249
        %v270 = vpop.permute.xlu0 %269
        %273 = vset.pattern.permute.xlu0 0
        %274 = vperm.xlu0 %273, %v250
        %v275 = vpop.permute.xlu0 %274
        %278 = vset.pattern.permute.xlu0 0
        %279 = vperm.xlu0 %278, %v251
        %v280 = vpop.permute.xlu0 %279
        %v286 = vunpack.c.l.b16 %v258
        %v287 = vunpack.c.l.b16 %v259
        %v288 = vunpack.c.l.b16 %v260
        %v289 = vunpack.c.l.b16 %v261
        %v290 = vpack.c.b16 %v287, %v286
        %v291 = vpack.c.b16 %v289, %v288
        %vm292 = vcmask 31744
        %v294 = vsel %vm292, %v290, 0
        %v297 = vsel %vm292, %v291, 0
        %vm299 = vcmask 1041408
        %v301 = vsel %vm299, %v256, 0
        %v304 = vsel %vm299, %v257, 0
        %306 = vmatprep.subr.bf16.mxu0 %v304
        %307 = vmatpush1.bf16.msra.mxu0 %v301
        %308 = vmatprep.subr.bf16.mxu0 0
        %309 = vmatpush1.bf16.msra.mxu0 0
        %310 = vmatprep.subr.bf16.mxu0 0
        %311 = vmatpush1.bf16.msra.mxu0 0
        %312 = vmatprep.subr.bf16.mxu0 0
        %313 = vmatpush1.bf16.msra.mxu0 0
        %314 = vmatprep.subr.bf16.mxu0 0
        %315 = vmatpush1.bf16.msra.mxu0 0
        %316 = vmatprep.subr.bf16.mxu0 0
        %317 = vmatpush1.bf16.msra.mxu0 0
        %318 = vmatprep.subr.bf16.mxu0 0
        %319 = vmatpush1.bf16.msra.mxu0 0
        %320 = vmatprep.subr.bf16.mxu0 0
        %321 = vmatpush1.bf16.msra.mxu0 0
        %322 = vmatprep.subr.bf16.mxu0 0
        %323 = vmatpush1.bf16.msra.mxu0 0
        %324 = vmatprep.subr.bf16.mxu0 0
        %325 = vmatpush1.bf16.msra.mxu0 0
        %326 = vmatprep.subr.bf16.mxu0 0
        %327 = vmatpush1.bf16.msra.mxu0 0
        %328 = vmatprep.subr.bf16.mxu0 0
        %329 = vmatpush1.bf16.msra.mxu0 0
        %330 = vmatprep.subr.bf16.mxu0 0
        %331 = vmatpush1.bf16.msra.mxu0 0
        %332 = vmatprep.subr.bf16.mxu0 0
        %333 = vmatpush1.bf16.msra.mxu0 0
        %334 = vmatprep.subr.bf16.mxu0 0
        %335 = vmatpush1.bf16.msra.mxu0 0
        %336 = vmatprep.subr.bf16.mxu0 0
        %337 = vmatpush1.bf16.msra.mxu0 0
        %338 = vmatprep.mubr.bf16.mxu0 0
        %339 = vmatmul.mubr.bf16.gmra.mrb[0].mxu0 %v294
        %v340 = vpop.f32.mrb[0].mxu0
        %v341 = vadd.f32 %v265, %v340
        %v342 = vpop.f32.mrb[0].mxu0
        %v343 = vadd.f32 %v265, %v342
        %v344 = vpop.f32.mrb[0].mxu0
        %v345 = vadd.f32 %v270, %v344
        %v346 = vpop.f32.mrb[0].mxu0
        %v347 = vadd.f32 %v270, %v346
        %348 = vmatprep.mubr.bf16.mxu0 0
        %349 = vmatmul.mubr.bf16.gmra.mrb[0].mxu0 %v297
        %v350 = vpop.f32.mrb[0].mxu0
        %v351 = vadd.f32 %v275, %v350
        %v352 = vpop.f32.mrb[0].mxu0
        %v353 = vadd.f32 %v275, %v352
        %v354 = vpop.f32.mrb[0].mxu0
        %v355 = vadd.f32 %v280, %v354
        %v356 = vpop.f32.mrb[0].mxu0
        %v357 = vadd.f32 %v280, %v356
        %358 = vdwg.mxu0
        %v359 = vmax.f32 %v341, 0.0
        %v360 = vmax.f32 %v343, 0.0
        %v361 = vmax.f32 %v345, 0.0
        %v362 = vmax.f32 %v347, 0.0
        %v363 = vmax.f32 %v351, 0.0
        %v364 = vmax.f32 %v353, 0.0
        %v365 = vmax.f32 %v355, 0.0
        %v366 = vmax.f32 %v357, 0.0
        %v367 = vld [vmem:[%s3] sm:$0xf]
        %v368 = vld [vmem:[%s3 + $0x4] sm:$0xf]
        %v369 = vld [vmem:[%s3 + $0x8] sm:$0xf]
        %v370 = vld [vmem:[%s3 + $0xc] sm:$0xf]
        %v371 = vpack.c.bf16 %v361, %v359
        %v372 = vpack.c.bf16 %v362, %v360
        %v373 = vpack.c.bf16 %v365, %v363
        %v374 = vpack.c.bf16 %v366, %v364
        %375 = vset.pattern.permute.xlu0 1
        %376 = vperm.xlu0 %375, %v248
        %v377 = vpop.permute.xlu0 %376
        %379 = vset.pattern.permute.xlu0 1
        %380 = vperm.xlu0 %379, %v249
        %v381 = vpop.permute.xlu0 %380
        %383 = vset.pattern.permute.xlu0 1
        %384 = vperm.xlu0 %383, %v250
        %v385 = vpop.permute.xlu0 %384
        %387 = vset.pattern.permute.xlu0 1
        %388 = vperm.xlu0 %387, %v251
        %v389 = vpop.permute.xlu0 %388
        %v395 = vunpack.c.l.b16 %v367
        %v396 = vunpack.c.l.b16 %v368
        %v397 = vunpack.c.l.b16 %v369
        %v398 = vunpack.c.l.b16 %v370
        %v399 = vpack.c.b16 %v396, %v395
        %v400 = vpack.c.b16 %v398, %v397
        %vm401 = vcmask 261120
        %v403 = vsel %vm401, %v399, 0
        %v406 = vsel %vm401, %v400, 0
        %408 = vmatprep.subr.bf16.mxu0 %v372
        %409 = vmatpush1.bf16.msra.mxu0 %v371
        %410 = vmatprep.subr.bf16.mxu0 %v374
        %411 = vmatpush1.bf16.msra.mxu0 %v373
        %412 = vmatprep.subr.bf16.mxu0 0
        %413 = vmatpush1.bf16.msra.mxu0 0
        %414 = vmatprep.subr.bf16.mxu0 0
        %415 = vmatpush1.bf16.msra.mxu0 0
        %416 = vmatprep.subr.bf16.mxu0 0
        %417 = vmatpush1.bf16.msra.mxu0 0
        %418 = vmatprep.subr.bf16.mxu0 0
        %419 = vmatpush1.bf16.msra.mxu0 0
        %420 = vmatprep.subr.bf16.mxu0 0
        %421 = vmatpush1.bf16.msra.mxu0 0
        %422 = vmatprep.subr.bf16.mxu0 0
        %423 = vmatpush1.bf16.msra.mxu0 0
        %424 = vmatprep.subr.bf16.mxu0 0
        %425 = vmatpush1.bf16.msra.mxu0 0
        %426 = vmatprep.subr.bf16.mxu0 0
        %427 = vmatpush1.bf16.msra.mxu0 0
        %428 = vmatprep.subr.bf16.mxu0 0
        %429 = vmatpush1.bf16.msra.mxu0 0
        %430 = vmatprep.subr.bf16.mxu0 0
        %431 = vmatpush1.bf16.msra.mxu0 0
        %432 = vmatprep.subr.bf16.mxu0 0
        %433 = vmatpush1.bf16.msra.mxu0 0
        %434 = vmatprep.subr.bf16.mxu0 0
        %435 = vmatpush1.bf16.msra.mxu0 0
        %436 = vmatprep.subr.bf16.mxu0 0
        %437 = vmatpush1.bf16.msra.mxu0 0
        %438 = vmatprep.subr.bf16.mxu0 0
        %439 = vmatpush1.bf16.msra.mxu0 0
        %440 = vmatprep.mubr.bf16.mxu0 0
        %441 = vmatmul.mubr.bf16.gmra.mrb[0].mxu0 %v403
        %v442 = vpop.f32.mrb[0].mxu0
        %v443 = vadd.f32 %v377, %v442
        %v444 = vpop.f32.mrb[0].mxu0
        %v445 = vadd.f32 %v377, %v444
        %v446 = vpop.f32.mrb[0].mxu0
        %v447 = vadd.f32 %v381, %v446
        %v448 = vpop.f32.mrb[0].mxu0
        %v449 = vadd.f32 %v381, %v448
        %450 = vmatprep.mubr.bf16.mxu0 0
        %451 = vmatmul.mubr.bf16.gmra.mrb[0].mxu0 %v406
        %v452 = vpop.f32.mrb[0].mxu0
        %v453 = vadd.f32 %v385, %v452
        %v454 = vpop.f32.mrb[0].mxu0
        %v455 = vadd.f32 %v385, %v454
        %v456 = vpop.f32.mrb[0].mxu0
        %v457 = vadd.f32 %v389, %v456
        %v458 = vpop.f32.mrb[0].mxu0
        %v459 = vadd.f32 %v389, %v458
        %460 = vdwg.mxu0
        %v461 = vmax.f32 %v443, 0.0
        %v462 = vmax.f32 %v445, 0.0
        %v463 = vmax.f32 %v447, 0.0
        %v464 = vmax.f32 %v449, 0.0
        %v465 = vmax.f32 %v453, 0.0
        %v466 = vmax.f32 %v455, 0.0
        %v467 = vmax.f32 %v457, 0.0
        %v468 = vmax.f32 %v459, 0.0
        %469 = vset.pattern.permute.xlu0 2
        %470 = vperm.xlu0 %469, %v248
        %v471 = vpop.permute.xlu0 %470
        %473 = vset.pattern.permute.xlu0 2
        %474 = vperm.xlu0 %473, %v249
        %v475 = vpop.permute.xlu0 %474
        %477 = vset.pattern.permute.xlu0 2
        %478 = vperm.xlu0 %477, %v250
        %v479 = vpop.permute.xlu0 %478
        %481 = vset.pattern.permute.xlu0 2
        %482 = vperm.xlu0 %481, %v251
        %v483 = vpop.permute.xlu0 %482
        %v485 = vmul.f32 %v461, %v471
        %v486 = vmul.f32 %v462, %v471
        %v487 = vmul.f32 %v463, %v475
        %v488 = vmul.f32 %v464, %v475
        %v489 = vmul.f32 %v465, %v479
        %v490 = vmul.f32 %v466, %v479
        %v491 = vmul.f32 %v467, %v483
        %v492 = vmul.f32 %v468, %v483
        %v493 = vadd.f32 %v485, %v487
        %v494 = vadd.f32 %v493, %v489
        %v495 = vadd.f32 %v494, %v491
        %v496 = vrot.slane %v495, 4
        %v497 = vadd.f32 %v495, %v496
        %v498 = vrot.slane %v497, 2
        %v499 = vadd.f32 %v497, %v498
        %v500 = vrot.slane %v499, 1
        %v501 = vadd.f32 %v499, %v500
        %v502 = vadd.f32 %v486, %v488
        %v503 = vadd.f32 %v502, %v490
        %v504 = vadd.f32 %v503, %v492
        %v505 = vrot.slane %v504, 4
        %v506 = vadd.f32 %v504, %v505
        %v507 = vrot.slane %v506, 2
        %v508 = vadd.f32 %v506, %v507
        %v509 = vrot.slane %v508, 1
        %v510 = vadd.f32 %v508, %v509
        %511 = vset.pattern.permute.xlu0 3
        %512 = vperm.xlu0 %511, %v248
        %v513 = vpop.permute.xlu0 %512
        %v515 = vadd.f32 %v501, %v513
        %v516 = vadd.f32 %v510, %v513
        %v519 = vcombine.low %v515, %v516
        %v521 = vunpack.c.l.s4 1966171168
        %v522 = vunpack.c.0.s8 %v521
        %v523 = vlaneseq
        %v524 = vshrl.u32 %v523, 7
        %v525 = vsub.s32 %v522, %v524
        %v526 = vrot.slane %v519, %v525
        %v528 = vunpack.c.l.s4 1966171168
        %v529 = vunpack.c.0.s8 %v528
        %v530 = vlaneseq
        %v531 = vshrl.u32 %v530, 7
        %v532 = vsub.s32 %v529, %v531
        %v533 = vrot.slane %v526, %v532
        %v535 = vlaneseq
        %vm536 = vcmp.ge.s32.totalorder %v535, 0
        %vm537 = vcmp.lt.s32.totalorder %v535, 256
        %vm538 = vmand %vm536, %vm537
        %539 = vst.msk [vmem:[%s230] sm:$0x3] %vm538, %v533
        %s540 = sand.u32 %s136, 1
        %s541 = scalar_lea.sflag [#allocation3], %s540
        %s542 = sand.u32 %s136, 1
        %s543 = smul.addr %s542, 2
        %s544 = scalar_lea.vmem [#allocation2], %s543
        // Predicated region
        $region37: #{tpu_custom_call.1} parent=35 // pred_check
          %p545 = pneg %p146
        $region38: #{tpu_custom_call.1} parent=35 // pred_check_branch
          %547 = sbr.rel (%p545) target = $region40
        $region39: #{tpu_custom_call.1} parent=35 // pred_region
          %s548 = smul.u32 2, %s23
          %s550 = ssub.s32 32, 32
          %551 = vsyncadd %s541, %s550
          %s552 = smul.addr %s22, 2
          %s553 = sadd.s32 %s548, %s552
          %s554 = smul.addr %s553, 16
          %s555 = scalar_lea.hbm %s4, %s554
          %s557 = sshll.u32 %s544, 4
          %s558 = int_to_ptr.vmem [resolvable:$true] %s557
          %560 = dma.vmem_to_hbm [thread:$0]  %s558, 32, %s555, %s541
        $region40: #{tpu_custom_call.1} parent=35 // pred_fallthru
          _
      $region36: #{tpu_custom_call.1} parent=5 // pred_fallthru
        _
      %p561 = scmp.le.s32.totalorder 2, %s13
      // Predicated region
      $region41: #{tpu_custom_call.1} parent=5 // pred_check
        %p562 = pneg %p561
      $region42: #{tpu_custom_call.1} parent=5 // pred_check_branch
        %564 = sbr.rel (%p562) target = $region44
      $region43: #{tpu_custom_call.1} parent=5 // pred_region
        %s565 = ssub.s32 %s13, 2
        // Predicated region
        $region45: #{tpu_custom_call.1} parent=43 // pred_check
          %p566 = pneg %p152
        $region46: #{tpu_custom_call.1} parent=43 // pred_check_branch
          %568 = sbr.rel (%p566) target = $region48
        $region47: #{tpu_custom_call.1} parent=43 // pred_region
          %s569 = sand.u32 %s137, 1
          %s570 = scalar_lea.sflag [#allocation3], %s569
          %s571 = sand.u32 %s137, 1
          %s572 = smul.addr %s571, 2
          %s573 = scalar_lea.vmem [#allocation2], %s572
          %574 = dma.done %s570, 32
        $region48: #{tpu_custom_call.1} parent=43 // pred_fallthru
          _
      $region44: #{tpu_custom_call.1} parent=5 // pred_fallthru
        _
    $region6: #{tpu_custom_call.1} parent=1 // loop_footer
      %s17 = sadd.s32 1, %s13
    $region7: #{tpu_custom_call.1} parent=1 // loop_footer_branch
      %12 = sbr.rel target = $region3
    $region8: #{tpu_custom_call.1} parent=1 // loop_exit
      _
    %575 = vsyncpa [#allocation3], 1
    %s576 = scalar_lea.sflag [#allocation3], 1
    %577 = vsyncpa %s576, 1

</llo_original>
